<compile_context>
chip_gen: v5e
topology: v5e:2x2
jax: 0.10.0
libtpu: 0.0.40
codegen_flags: <defaults>
</compile_context>

<pallas_src>
import jax
import jax.numpy as jnp
from jax.experimental import pallas as pl
from jax.experimental.pallas import tpu as pltpu

DEGREE = 6  # lr, rr, mlp, gat, gcn, mag predictions


def _linreg_kernel(x_ref, wb_ref, o_ref):
    # x_ref:  (DEGREE, tile_n) f32 in VMEM  (lane-dense sample axis)
    # wb_ref: (DEGREE + 1,)    f32 in SMEM  -> [w0..w5, b]
    # o_ref:  (1, tile_n)      f32 in VMEM
    acc = jnp.full(o_ref.shape, wb_ref[DEGREE], dtype=jnp.float32)  # start from bias
    for k in range(DEGREE):  # unrolled: 6 broadcast-scalar FMAs on the VPU
        acc = acc + wb_ref[k] * x_ref[pl.ds(k, 1), :]
    o_ref[...] = acc


def linear_regression_forward(preds, weight, bias, *, tile_n=8192):
    """preds: sequence of 6 arrays, each shape (N,).
    weight: (1, DEGREE) like torch.nn.Linear.weight, bias: (1,).
    Returns (N, 1) float32, same semantics as the PyTorch module."""
    # Host-side glue (equivalent of the torch.stack over dataframe columns),
    # but stacked along axis 0 so the sample axis is the lane axis.
    x = jnp.stack([jnp.asarray(p, dtype=jnp.float32) for p in preds], axis=0)  # (DEGREE, N)
    n = x.shape[1]

    # Pick a lane-aligned tile (multiple of 128), no larger than needed.
    n_lane_pad = pl.cdiv(n, 128) * 128
    tile = max(128, min((tile_n // 128) * 128, n_lane_pad))
    n_pad = pl.cdiv(n, tile) * tile
    if n_pad != n:
        x = jnp.pad(x, ((0, 0), (0, n_pad - n)))

    # Flat parameter vector [w0..w5, b] -> SMEM (read as 7 scalars in-kernel).
    wb = jnp.concatenate(
        [jnp.asarray(weight, jnp.float32).reshape(-1),
         jnp.asarray(bias, jnp.float32).reshape(-1)]
    )  # (DEGREE + 1,)

    grid = (n_pad // tile,)
    out = pl.pallas_call(
        _linreg_kernel,
        out_shape=jax.ShapeDtypeStruct((1, n_pad), jnp.float32),
        grid_spec=pltpu.PrefetchScalarGridSpec(
            num_scalar_prefetch=0,
            grid=grid,
            in_specs=[
                pl.BlockSpec((DEGREE, tile), lambda i: (0, i)),
                pl.BlockSpec(memory_space=pltpu.MemorySpace.SMEM),
            ],
            out_specs=pl.BlockSpec((1, tile), lambda i: (0, i)),
        ),
        compiler_params=pltpu.CompilerParams(
            dimension_semantics=("parallel",),  # shards grid across cores (megacore / v7x)
        ),
    )(x, wb)

    # Drop padding, return (N, 1) like nn.Linear(degree, 1).
    return out[0, :n].reshape(n, 1)


if __name__ == "__main__":
    key = jax.random.PRNGKey(0)
    k_cols, k_w, k_b = jax.random.split(key, 3)

    N = 16  # small demo: number of samples ("dataframe" rows)

    # Six prediction columns, like df['lr_pred'], df['rr_pred'], ...
    col_keys = jax.random.split(k_cols, DEGREE)
    preds = [jax.random.normal(ck, (N,), dtype=jnp.float32) for ck in col_keys]

    # nn.Linear(degree, 1) parameter shapes: weight (1, DEGREE), bias (1,)
    bound = 1.0 / (DEGREE ** 0.5)
    weight = jax.random.uniform(k_w, (1, DEGREE), jnp.float32, -bound, bound)
    bias = jax.random.uniform(k_b, (1,), jnp.float32, -bound, bound)

    out = linear_regression_forward(preds, weight, bias)
    out = jax.block_until_ready(out)

    # Pure-JAX reference check (same math as torch Linear)
    x_ref = jnp.stack(preds, axis=1)          # (N, DEGREE)
    ref = x_ref @ weight.T + bias             # (N, 1)
    assert out.shape == (N, 1)
    assert jnp.allclose(out, ref, atol=1e-5, rtol=1e-5)

    print("KERNEL_OK")
</pallas_src>

<mosaic_0001>
module attributes {stable_mosaic.version = 11 : i64} {
  func.func @_linreg_kernel(%arg0: i32, %arg1: memref<6x128xf32, #tpu.memory_space<vmem>>, %arg2: memref<7xf32, #tpu.memory_space<smem>>, %arg3: memref<1x128xf32, #tpu.memory_space<vmem>>) attributes {dimension_semantics = [#tpu.dimension_semantics<parallel>], iteration_bounds = array<i64: 1>, scalar_prefetch = 0 : i64, scratch_operands = 0 : i64, tpu.core_type = #tpu.core_type<tc>, window_params = [{transform_indices = @transform_0, window_bounds = array<i64: 6, 128>}, {transform_indices = @transform_1, window_bounds = array<i64: 7>}, {transform_indices = @transform_2, window_bounds = array<i64: 1, 128>}]} {
    %c6 = arith.constant 6 : index
    %0 = memref.load %arg2[%c6] : memref<7xf32, #tpu.memory_space<smem>>
    %1 = vector.broadcast %0 : f32 to vector<1x128xf32>
    %c0 = arith.constant 0 : index
    %2 = memref.load %arg2[%c0] : memref<7xf32, #tpu.memory_space<smem>>
    %c0_0 = arith.constant 0 : index
    %c0_1 = arith.constant 0 : index
    %3 = vector.load %arg1[%c0_0, %c0_1] : memref<6x128xf32, #tpu.memory_space<vmem>>, vector<1x128xf32>
    %4 = vector.broadcast %2 : f32 to vector<1x128xf32>
    %5 = arith.mulf %4, %3 : vector<1x128xf32>
    %6 = arith.addf %1, %5 : vector<1x128xf32>
    %c1 = arith.constant 1 : index
    %7 = memref.load %arg2[%c1] : memref<7xf32, #tpu.memory_space<smem>>
    %c1_2 = arith.constant 1 : index
    %c0_3 = arith.constant 0 : index
    %8 = vector.load %arg1[%c1_2, %c0_3] : memref<6x128xf32, #tpu.memory_space<vmem>>, vector<1x128xf32>
    %9 = vector.broadcast %7 : f32 to vector<1x128xf32>
    %10 = arith.mulf %9, %8 : vector<1x128xf32>
    %11 = arith.addf %6, %10 : vector<1x128xf32>
    %c2 = arith.constant 2 : index
    %12 = memref.load %arg2[%c2] : memref<7xf32, #tpu.memory_space<smem>>
    %c2_4 = arith.constant 2 : index
    %c0_5 = arith.constant 0 : index
    %13 = vector.load %arg1[%c2_4, %c0_5] : memref<6x128xf32, #tpu.memory_space<vmem>>, vector<1x128xf32>
    %14 = vector.broadcast %12 : f32 to vector<1x128xf32>
    %15 = arith.mulf %14, %13 : vector<1x128xf32>
    %16 = arith.addf %11, %15 : vector<1x128xf32>
    %c3 = arith.constant 3 : index
    %17 = memref.load %arg2[%c3] : memref<7xf32, #tpu.memory_space<smem>>
    %c3_6 = arith.constant 3 : index
    %c0_7 = arith.constant 0 : index
    %18 = vector.load %arg1[%c3_6, %c0_7] : memref<6x128xf32, #tpu.memory_space<vmem>>, vector<1x128xf32>
    %19 = vector.broadcast %17 : f32 to vector<1x128xf32>
    %20 = arith.mulf %19, %18 : vector<1x128xf32>
    %21 = arith.addf %16, %20 : vector<1x128xf32>
    %c4 = arith.constant 4 : index
    %22 = memref.load %arg2[%c4] : memref<7xf32, #tpu.memory_space<smem>>
    %c4_8 = arith.constant 4 : index
    %c0_9 = arith.constant 0 : index
    %23 = vector.load %arg1[%c4_8, %c0_9] : memref<6x128xf32, #tpu.memory_space<vmem>>, vector<1x128xf32>
    %24 = vector.broadcast %22 : f32 to vector<1x128xf32>
    %25 = arith.mulf %24, %23 : vector<1x128xf32>
    %26 = arith.addf %21, %25 : vector<1x128xf32>
    %c5 = arith.constant 5 : index
    %27 = memref.load %arg2[%c5] : memref<7xf32, #tpu.memory_space<smem>>
    %c5_10 = arith.constant 5 : index
    %c0_11 = arith.constant 0 : index
    %28 = vector.load %arg1[%c5_10, %c0_11] : memref<6x128xf32, #tpu.memory_space<vmem>>, vector<1x128xf32>
    %29 = vector.broadcast %27 : f32 to vector<1x128xf32>
    %30 = arith.mulf %29, %28 : vector<1x128xf32>
    %31 = arith.addf %26, %30 : vector<1x128xf32>
    %c0_12 = arith.constant 0 : index
    %c0_13 = arith.constant 0 : index
    %32 = vector.load %arg3[%c0_12, %c0_13] : memref<1x128xf32, #tpu.memory_space<vmem>>, vector<1x128xf32>
    tpu.vector_store %arg3[%c0_12, %c0_13], %31 {strides = array<i32>} : memref<1x128xf32, #tpu.memory_space<vmem>>, vector<1x128xf32>,
    return
  }
  func.func @transform_0(%arg0: i32) -> (i32, i32) {
    %c0_i32 = arith.constant 0 : i32
    %c0_i32_0 = arith.constant 0 : i32
    return %c0_i32, %arg0 : i32, i32
  }
  func.func @transform_1(%arg0: i32) -> i32 {
    %c0_i32 = arith.constant 0 : i32
    %c0_i32_0 = arith.constant 0 : i32
    return %c0_i32 : i32
  }
  func.func @transform_2(%arg0: i32) -> (i32, i32) {
    %c0_i32 = arith.constant 0 : i32
    %c0_i32_0 = arith.constant 0 : i32
    return %c0_i32, %arg0 : i32, i32
  }
}

</mosaic_0001>

<llo_original>
// kernel: tpu_custom_call.1
$region0: #{tpu_custom_call.1}
  #allocation0 [shape = 'u32[]', space=smem, size = 0x4, offset = 0x4, fixed_abs, tag = 'smem constant byte address 0x4 - core index']
  #allocation1 [shape = 'u32[72,128]{1,0:T(1,128)}', space=vmem, size = 0x9000, scoped, tag = 'internal scratch']
  %s0 = inlined_call_operand.hbm [shape: f32[6,128], index: 0, kind: input, shape index: {}]
  %s1 = inlined_call_operand.hbm [shape: f32[7], index: 1, kind: input, shape index: {}]
  %s2 = inlined_call_operand.hbm [shape: f32[1,128], index: 2, kind: output, shape index: {}]
  %s3 = sld [smem:[#allocation0]]
  $region26: #{tpu_custom_call.1} parent=0
    _
  %s5 = ssub.s32 1, %s3
  %s6 = scalar_select 0, %s5, %s3
  $region1: #{tpu_custom_call.1} parent=0
    #allocation2 [shape = 'u8[4096]{0}', space=vmem, size = 0x1000, scoped, tag = 'input window, operand 0, single buffered']
    #allocation3 [shape = 's32[1]{0}', space=sflag, size = 0x4, scoped, tag = 'scoped memory for tpu_custom_call.1']
    #allocation4 [shape = 's32[1]{0}', space=sflag, size = 0x4, scoped, tag = 'scoped memory for tpu_custom_call.1']
    #allocation5 [shape = 's32[1]{0}', space=sflag, size = 0x4, scoped, tag = 'scoped memory for tpu_custom_call.1']
    #allocation6 [shape = 'u8[512]{0}', space=smem, size = 0x200, scoped, tag = 'input window, operand 1, single buffered']
    #allocation7 [shape = 'u8[512]{0}', space=vmem, size = 0x400, scoped, tag = 'output window, operand 0, single buffered']
    %7 = vsyncpa [#allocation3], 0
    %8 = vsyncpa [#allocation5], 0
    %9 = vsyncpa [#allocation4], 0
    // Predicated region
    $region2: #{tpu_custom_call.1} parent=1 // pred_check
      _
    $region3: #{tpu_custom_call.1} parent=1 // pred_check_branch
      %11 = sbr.rel (0) target = $region5
    $region4: #{tpu_custom_call.1} parent=1 // pred_region
      %13 = vsyncadd [#allocation3], 0
      %s15 = sshll.u32 %s0, 4
      %s16 = int_to_ptr.hbm [resolvable:$true] %s15
      %s17 = sshll.u32 [#allocation2], 4
      %s18 = int_to_ptr.vmem [resolvable:$true] %s17
      %20 = dma.hbm_to_vmem [thread:$0]  %s16, 128, %s18, [#allocation3]
    $region5: #{tpu_custom_call.1} parent=1 // pred_fallthru
      _
    // Predicated region
    $region6: #{tpu_custom_call.1} parent=1 // pred_check
      _
    $region7: #{tpu_custom_call.1} parent=1 // pred_check_branch
      %22 = sbr.rel (0) target = $region9
    $region8: #{tpu_custom_call.1} parent=1 // pred_region
      %24 = vsyncadd [#allocation5], 0
      %s26 = sshll.u32 %s1, 4
      %s27 = int_to_ptr.hbm [resolvable:$true] %s26
      %29 = dma.hbm_to_smem %s27, 16, [#allocation6], [#allocation5]
    $region9: #{tpu_custom_call.1} parent=1 // pred_fallthru
      _
    // Predicated region
    $region10: #{tpu_custom_call.1} parent=1 // pred_check
      _
    $region11: #{tpu_custom_call.1} parent=1 // pred_check_branch
      %31 = sbr.rel (0) target = $region13
    $region12: #{tpu_custom_call.1} parent=1 // pred_region
      %33 = dma.done [#allocation3], 128
    $region13: #{tpu_custom_call.1} parent=1 // pred_fallthru
      _
    // Predicated region
    $region14: #{tpu_custom_call.1} parent=1 // pred_check
      _
    $region15: #{tpu_custom_call.1} parent=1 // pred_check_branch
      %35 = sbr.rel (0) target = $region17
    $region16: #{tpu_custom_call.1} parent=1 // pred_region
      %37 = dma.done [#allocation5], 16
    $region17: #{tpu_custom_call.1} parent=1 // pred_fallthru
      _
    %38 = sfence
    %s39 = sld [smem:[#allocation6 + $0x6]]
    %v40 = vstv %s39
    %s41 = sld [smem:[#allocation6]]
    %v42 = vld [vmem:[#allocation2] sm:$0x1]
    %v43 = vstv %s41
    %v44 = vmul.f32 %v43, %v42
    %v45 = vadd.f32 %v40, %v44
    %s46 = sld [smem:[#allocation6 + $0x1]]
    %v47 = vld [vmem:[#allocation2 + $0x1] sm:$0x1]
    %v48 = vstv %s46
    %v49 = vmul.f32 %v48, %v47
    %v50 = vadd.f32 %v45, %v49
    %s51 = sld [smem:[#allocation6 + $0x2]]
    %v52 = vld [vmem:[#allocation2 + $0x2] sm:$0x1]
    %v53 = vstv %s51
    %v54 = vmul.f32 %v53, %v52
    %v55 = vadd.f32 %v50, %v54
    %s56 = sld [smem:[#allocation6 + $0x3]]
    %v57 = vld [vmem:[#allocation2 + $0x3] sm:$0x1]
    %v58 = vstv %s56
    %v59 = vmul.f32 %v58, %v57
    %v60 = vadd.f32 %v55, %v59
    %s61 = sld [smem:[#allocation6 + $0x4]]
    %v62 = vld [vmem:[#allocation2 + $0x4] sm:$0x1]
    %v63 = vstv %s61
    %v64 = vmul.f32 %v63, %v62
    %v65 = vadd.f32 %v60, %v64
    %s66 = sld [smem:[#allocation6 + $0x5]]
    %v67 = vld [vmem:[#allocation2 + $0x5] sm:$0x1]
    %v68 = vstv %s66
    %v69 = vmul.f32 %v68, %v67
    %v70 = vadd.f32 %v65, %v69
    %71 = vst [vmem:[#allocation7] sm:$0x1] %v70
    // Predicated region
    $region18: #{tpu_custom_call.1} parent=1 // pred_check
      _
    $region19: #{tpu_custom_call.1} parent=1 // pred_check_branch
      %73 = sbr.rel (0) target = $region21
    $region20: #{tpu_custom_call.1} parent=1 // pred_region
      %75 = vsyncadd [#allocation4], 0
      %s77 = sshll.u32 [#allocation7], 4
      %s78 = int_to_ptr.vmem [resolvable:$true] %s77
      %s79 = sshll.u32 %s2, 4
      %s80 = int_to_ptr.hbm [resolvable:$true] %s79
      %82 = dma.vmem_to_hbm [thread:$0]  %s78, 16, %s80, [#allocation4]
    $region21: #{tpu_custom_call.1} parent=1 // pred_fallthru
      _
    // Predicated region
    $region22: #{tpu_custom_call.1} parent=1 // pred_check
      _
    $region23: #{tpu_custom_call.1} parent=1 // pred_check_branch
      %84 = sbr.rel (0) target = $region25
    $region24: #{tpu_custom_call.1} parent=1 // pred_region
      %86 = dma.done [#allocation4], 16
    $region25: #{tpu_custom_call.1} parent=1 // pred_fallthru
      _
    %87 = vsyncpa [#allocation3], 1
    %88 = vsyncpa [#allocation4], 1
    %89 = vsyncpa [#allocation5], 1

</llo_original>
